<compile_context>
chip_gen: v5e
topology: v5e:2x2
jax: 0.10.0
libtpu: 0.0.40
codegen_flags: <defaults>
</compile_context>

<pallas_src>
import numpy as np
import jax
import jax.numpy as jnp
from jax.experimental import pallas as pl
from jax.experimental.pallas import tpu as pltpu

_LANES = 128


def _split_kernel(x_ref, even_ref, odd_ref):
    # x_ref:    (1, tile_th, 2*C) -- row t holds [x[2t, :], x[2t+1, :]] in lanes
    # even_ref: (1, tile_th, C)
    # odd_ref:  (1, tile_th, C)
    C = even_ref.shape[-1]
    # Store straight from ref slices (no x = x_ref[...] materialization).
    even_ref[...] = x_ref[:, :, :C]
    odd_ref[...] = x_ref[:, :, C:]


def _sublane_pack(itemsize):
    # f32 -> 8 rows, bf16 -> 16, int8/fp8 -> 32.
    return max(8, 32 // max(1, itemsize))


def _padded_row_bytes(n_lanes, itemsize):
    # VMEM rows are padded to a whole number of 128-lane vreg rows.
    return pl.cdiv(n_lanes, _LANES) * _LANES * itemsize


def _vmem_limits():
    try:
        cap = getattr(pltpu.get_tpu_info(), "vmem_capacity_bytes", 64 << 20)
    except Exception:
        cap = 64 << 20  # conservative default = v7x per-core VMEM
    scoped = min(cap // 2, 32 << 20)
    block_budget = (scoped * 3) // 5  # leave headroom for Pallas bookkeeping
    return scoped, block_budget


def _choose_tile_th(Th, C, itemsize, block_budget):
    sub = _sublane_pack(itemsize)
    # Padded VMEM bytes per time-row across (input + even + odd) blocks.
    per_row = _padded_row_bytes(2 * C, itemsize) + 2 * _padded_row_bytes(C, itemsize)
    # Every block is double-buffered by the pipeline.
    tile = max(1, block_budget // (2 * per_row))
    tile = max(sub, (tile // sub) * sub)
    if tile >= Th:
        return Th  # block == full dim: always a legal block shape
    return tile


def _splitting_even_t(x):
    B, T, C = x.shape
    Th = T // 2
    itemsize = jnp.dtype(x.dtype).itemsize

    scoped_vmem, block_budget = _vmem_limits()
    tile_th = _choose_tile_th(Th, C, itemsize, block_budget)
    grid = (B, pl.cdiv(Th, tile_th))

    # Free contiguous view (no data movement): (B, T, C) -> (B, T//2, 2*C).
    x3 = x.reshape(B, Th, 2 * C)

    bytes_accessed = 2 * B * T * C * itemsize  # read x once, write even + odd

    even, odd = pl.pallas_call(
        _split_kernel,
        out_shape=(
            jax.ShapeDtypeStruct((B, Th, C), x.dtype),
            jax.ShapeDtypeStruct((B, Th, C), x.dtype),
        ),
        grid=grid,
        in_specs=[pl.BlockSpec((1, tile_th, 2 * C), lambda b, t: (b, t, 0))],
        out_specs=(
            pl.BlockSpec((1, tile_th, C), lambda b, t: (b, t, 0)),
            pl.BlockSpec((1, tile_th, C), lambda b, t: (b, t, 0)),
        ),
        compiler_params=pltpu.CompilerParams(
            dimension_semantics=("parallel", "parallel"),
            vmem_limit_bytes=scoped_vmem,
        ),
        cost_estimate=pl.CostEstimate(
            flops=0, transcendentals=0, bytes_accessed=bytes_accessed),
    )(x3)
    return even, odd


def splitting_forward(x):
    """Pallas implementation of Splitting.forward: (x[:, ::2, :], x[:, 1::2, :])."""
    B, T, C = x.shape
    if T < 2:
        # Degenerate sizes: trivial strided slices.
        return x[:, ::2, :], x[:, 1::2, :]
    if T % 2 == 1:
        # PyTorch semantics for odd T: even half gets the extra (last) row.
        even, odd = _splitting_even_t(x[:, : T - 1, :])
        even = jnp.concatenate([even, x[:, T - 1:, :]], axis=1)
        return even, odd
    return _splitting_even_t(x)


if __name__ == "__main__":
    key0, key1 = jax.random.split(jax.random.PRNGKey(0))

    # Small shapes consistent with the module's (batch, time, channels) input.
    B, T, C = 2, 16, 4
    x = jax.random.normal(key0, (B, T, C), jnp.float32)
    even, odd = splitting_forward(x)
    jax.block_until_ready((even, odd))
    np.testing.assert_array_equal(np.asarray(even), np.asarray(x)[:, ::2, :])
    np.testing.assert_array_equal(np.asarray(odd), np.asarray(x)[:, 1::2, :])

    # Odd time length (even half gets the extra row, matching PyTorch slicing).
    x2 = jax.random.normal(key1, (2, 9, 4), jnp.float32)
    even2, odd2 = splitting_forward(x2)
    jax.block_until_ready((even2, odd2))
    np.testing.assert_array_equal(np.asarray(even2), np.asarray(x2)[:, ::2, :])
    np.testing.assert_array_equal(np.asarray(odd2), np.asarray(x2)[:, 1::2, :])

    print("KERNEL_OK")
</pallas_src>

<mosaic_0001>
module attributes {stable_mosaic.version = 11 : i64} {
  func.func @_split_kernel(%arg0: i32, %arg1: i32, %arg2: memref<1x8x8xf32, #tpu.memory_space<vmem>>, %arg3: memref<1x8x4xf32, #tpu.memory_space<vmem>>, %arg4: memref<1x8x4xf32, #tpu.memory_space<vmem>>) attributes {dimension_semantics = [#tpu.dimension_semantics<parallel>, #tpu.dimension_semantics<parallel>], iteration_bounds = array<i64: 2, 1>, scalar_prefetch = 0 : i64, scratch_operands = 0 : i64, tpu.core_type = #tpu.core_type<tc>, window_params = [{transform_indices = @transform_0, window_bounds = array<i64: 1, 8, 8>}, {transform_indices = @transform_1, window_bounds = array<i64: 1, 8, 4>}, {transform_indices = @transform_2, window_bounds = array<i64: 1, 8, 4>}]} {
    %c0 = arith.constant 0 : index
    %c0_0 = arith.constant 0 : index
    %c0_1 = arith.constant 0 : index
    %0 = vector.load %arg2[%c0, %c0_0, %c0_1] : memref<1x8x8xf32, #tpu.memory_space<vmem>>, vector<1x8x4xf32>
    %c0_2 = arith.constant 0 : index
    %c0_3 = arith.constant 0 : index
    %c0_4 = arith.constant 0 : index
    %1 = vector.load %arg3[%c0_2, %c0_3, %c0_4] : memref<1x8x4xf32, #tpu.memory_space<vmem>>, vector<1x8x4xf32>
    tpu.vector_store %arg3[%c0_2, %c0_3, %c0_4], %0 {strides = array<i32>} : memref<1x8x4xf32, #tpu.memory_space<vmem>>, vector<1x8x4xf32>,
    %c0_5 = arith.constant 0 : index
    %c0_6 = arith.constant 0 : index
    %c4 = arith.constant 4 : index
    %2 = vector.load %arg2[%c0_5, %c0_6, %c4] : memref<1x8x8xf32, #tpu.memory_space<vmem>>, vector<1x8x4xf32>
    %c0_7 = arith.constant 0 : index
    %c0_8 = arith.constant 0 : index
    %c0_9 = arith.constant 0 : index
    %3 = vector.load %arg4[%c0_7, %c0_8, %c0_9] : memref<1x8x4xf32, #tpu.memory_space<vmem>>, vector<1x8x4xf32>
    tpu.vector_store %arg4[%c0_7, %c0_8, %c0_9], %2 {strides = array<i32>} : memref<1x8x4xf32, #tpu.memory_space<vmem>>, vector<1x8x4xf32>,
    return
  }
  func.func @transform_0(%arg0: i32, %arg1: i32) -> (i32, i32, i32) {
    %c0_i32 = arith.constant 0 : i32
    %c0_i32_0 = arith.constant 0 : i32
    return %arg0, %arg1, %c0_i32 : i32, i32, i32
  }
  func.func @transform_1(%arg0: i32, %arg1: i32) -> (i32, i32, i32) {
    %c0_i32 = arith.constant 0 : i32
    %c0_i32_0 = arith.constant 0 : i32
    return %arg0, %arg1, %c0_i32 : i32, i32, i32
  }
  func.func @transform_2(%arg0: i32, %arg1: i32) -> (i32, i32, i32) {
    %c0_i32 = arith.constant 0 : i32
    %c0_i32_0 = arith.constant 0 : i32
    return %arg0, %arg1, %c0_i32 : i32, i32, i32
  }
}

</mosaic_0001>

<llo_original>
// kernel: tpu_custom_call.1
$region0: #{tpu_custom_call.1}
  #allocation0 [shape = 'u32[]', space=smem, size = 0x4, offset = 0x4, fixed_abs, tag = 'smem constant byte address 0x4 - core index']
  #allocation1 [shape = 'u32[72,128]{1,0:T(1,128)}', space=vmem, size = 0x9000, scoped, tag = 'internal scratch']
  %s0 = inlined_call_operand.hbm [shape: f32[2,8,8], index: 0, kind: input, shape index: {}]
  %s1 = inlined_call_operand.vmem [shape: f32[2,8,4], index: 1, kind: output, shape index: {0}]
  %s2 = inlined_call_operand.vmem [shape: f32[2,8,4], index: 2, kind: output, shape index: {1}]
  %3 = xla_tuple %s1, %s2
  %s4 = sld [smem:[#allocation0]]
  $region49: #{tpu_custom_call.1} parent=0
    _
  %s6 = ssub.s32 1, %s4
  %s7 = scalar_select 0, %s6, %s4
  $region1: #{tpu_custom_call.1} parent=0
    #allocation2 [shape = 'u8[8192]{0}', space=vmem, size = 0x2000, scoped, tag = 'input window, operand 0']
    #allocation3 [shape = 's32[2]{0}', space=sflag, size = 0x8, scoped, tag = 'scoped memory for tpu_custom_call.1']
    %8 = vsyncpa [#allocation3], 0
    %s9 = scalar_lea.sflag [#allocation3], 1
    %10 = vsyncpa %s9, 0
    loop: start=0, step=1, limit=4
    $region2: #{tpu_custom_call.1} parent=1 // loop_pre_header
      _
    $region3: #{tpu_custom_call.1} parent=1 // loop_header
      %s12 = sphi 0, %s16
      %p13 = scmp.ge.s32.totalorder %s12, 4
      %s19 = sphi 0, %s31
      %s20 = sphi 0, %s27
      %s21 = sphi 0, %s19
      %s22 = sphi 0, %s20
      %s23 = sphi 0, %s21
      %s24 = sphi 0, %s22
      %s36 = sphi 0, %s38
      %s39 = sphi 0, %s36
      %s40 = sphi 0, %s39
      %s56 = sphi 0, %s40
      %s64 = sphi 0, %s66
      %s67 = sphi 0, %s64
      %s68 = sphi 0, %s67
      %s84 = sphi 0, %s68
      %s92 = sphi 0, %s94
      %s95 = sphi 0, %s92
      %s96 = sphi 0, %s95
      %s112 = sphi 0, %s96
    $region4: #{tpu_custom_call.1} parent=1 // loop_header_branch
      %15 = sbr.rel (%p13) target = $region8
    $region5: #{tpu_custom_call.1} parent=1 // loop_body
      %s17 = ssub.s32 %s12, 1
      %s18 = ssub.s32 %s12, 2
      %s25 = sadd.s32 1, %s20
      %p26 = scmp.ge.s32.totalorder %s25, 1
      %s27 = scalar_select %p26, 0, %s25
      %s28 = sadd.s32 1, %s19
      %s29 = scalar_select %p26, %s28, %s19
      %p30 = scmp.ge.s32.totalorder %s29, 2
      %s31 = scalar_select %p30, 0, %s29
      %s32 = ssub.s32 %s19, %s31
      %s33 = ssub.s32 %s20, %s27
      %s34 = sor.u32 %s32, %s33
      %p35 = scmp.eq.s32.totalorder %s34, 0
      %s37 = sadd.s32 %s36, 1
      %s38 = scalar_select %p35, %s36, %s37
      %p41 = pneg %p35
      %p42 = scmp.eq.s32.totalorder %s12, 1
      %p43 = por %p41, %p42
      %p44 = scmp.ne.s32.totalorder %s36, %s39
      %p45 = scmp.eq.s32.totalorder %s12, 0
      %p46 = por %p44, %p45
      %p47 = scmp.ne.s32.totalorder %s36, %s39
      %p48 = scmp.eq.s32.totalorder %s17, 1
      %p49 = por %p47, %p48
      %p50 = scmp.ne.s32.totalorder %s39, %s40
      %p51 = scmp.eq.s32.totalorder %s17, 0
      %p52 = por %p50, %p51
      %p53 = scmp.ne.s32.totalorder %s39, %s40
      %p54 = scmp.eq.s32.totalorder %s18, 1
      %p55 = por %p53, %p54
      %p57 = scmp.ne.s32.totalorder %s40, %s56
      %p58 = scmp.eq.s32.totalorder %s18, 0
      %p59 = por %p57, %p58
      %s60 = ssub.s32 %s19, %s31
      %s61 = ssub.s32 %s20, %s27
      %s62 = sor.u32 %s60, %s61
      %p63 = scmp.eq.s32.totalorder %s62, 0
      %s65 = sadd.s32 %s64, 1
      %s66 = scalar_select %p63, %s64, %s65
      %p69 = pneg %p63
      %p70 = scmp.eq.s32.totalorder %s12, 1
      %p71 = por %p69, %p70
      %p72 = scmp.ne.s32.totalorder %s64, %s67
      %p73 = scmp.eq.s32.totalorder %s12, 0
      %p74 = por %p72, %p73
      %p75 = scmp.ne.s32.totalorder %s64, %s67
      %p76 = scmp.eq.s32.totalorder %s17, 1
      %p77 = por %p75, %p76
      %p78 = scmp.ne.s32.totalorder %s67, %s68
      %p79 = scmp.eq.s32.totalorder %s17, 0
      %p80 = por %p78, %p79
      %p81 = scmp.ne.s32.totalorder %s67, %s68
      %p82 = scmp.eq.s32.totalorder %s18, 1
      %p83 = por %p81, %p82
      %p85 = scmp.ne.s32.totalorder %s68, %s84
      %p86 = scmp.eq.s32.totalorder %s18, 0
      %p87 = por %p85, %p86
      %s88 = ssub.s32 %s19, %s31
      %s89 = ssub.s32 %s20, %s27
      %s90 = sor.u32 %s88, %s89
      %p91 = scmp.eq.s32.totalorder %s90, 0
      %s93 = sadd.s32 %s92, 1
      %s94 = scalar_select %p91, %s92, %s93
      %p97 = pneg %p91
      %p98 = scmp.eq.s32.totalorder %s12, 1
      %p99 = por %p97, %p98
      %p100 = scmp.ne.s32.totalorder %s92, %s95
      %p101 = scmp.eq.s32.totalorder %s12, 0
      %p102 = por %p100, %p101
      %p103 = scmp.ne.s32.totalorder %s92, %s95
      %p104 = scmp.eq.s32.totalorder %s17, 1
      %p105 = por %p103, %p104
      %p106 = scmp.ne.s32.totalorder %s95, %s96
      %p107 = scmp.eq.s32.totalorder %s17, 0
      %p108 = por %p106, %p107
      %p109 = scmp.ne.s32.totalorder %s95, %s96
      %p110 = scmp.eq.s32.totalorder %s18, 1
      %p111 = por %p109, %p110
      %p113 = scmp.ne.s32.totalorder %s96, %s112
      %p114 = scmp.eq.s32.totalorder %s18, 0
      %p115 = por %p113, %p114
      %p116 = scmp.le.s32.totalorder 1, %s12
      %p117 = scmp.lt.s32.totalorder %s12, 3
      %p118 = pnand %p116, %p117
      %p119 = pneg %p118
      // Predicated region
      $region9: #{tpu_custom_call.1} parent=5 // pred_check
        _
      $region10: #{tpu_custom_call.1} parent=5 // pred_check_branch
        %121 = sbr.rel (%p118) target = $region12
      $region11: #{tpu_custom_call.1} parent=5 // pred_region
        %s122 = ssub.s32 %s12, 1
      $region12: #{tpu_custom_call.1} parent=5 // pred_fallthru
        _
      %p123 = scmp.lt.s32.totalorder %s12, 2
      // Predicated region
      $region13: #{tpu_custom_call.1} parent=5 // pred_check
        %p124 = pneg %p123
      $region14: #{tpu_custom_call.1} parent=5 // pred_check_branch
        %126 = sbr.rel (%p124) target = $region16
      $region15: #{tpu_custom_call.1} parent=5 // pred_region
        // Predicated region
        $region17: #{tpu_custom_call.1} parent=15 // pred_check
          %p127 = pneg %p46
        $region18: #{tpu_custom_call.1} parent=15 // pred_check_branch
          %129 = sbr.rel (%p127) target = $region20
        $region19: #{tpu_custom_call.1} parent=15 // pred_region
          %s130 = sand.u32 %s36, 1
          %s131 = scalar_lea.sflag [#allocation3], %s130
          %s132 = sand.u32 %s36, 1
          %s133 = smul.addr %s132, 8
          %s134 = scalar_lea.vmem [#allocation2], %s133
          %136 = vsyncadd %s131, 0
          %s137 = sadd.s32 %s20, %s19
          %s138 = smul.addr %s137, 8
          %s139 = scalar_lea.hbm %s0, %s138
          %s141 = sshll.u32 %s139, 4
          %s142 = int_to_ptr.hbm [resolvable:$true] %s141
          %s143 = sshll.u32 %s134, 4
          %s144 = int_to_ptr.vmem [resolvable:$true] %s143
          %146 = dma.hbm_to_vmem [thread:$0]  %s142, 128, %s144, %s131
        $region20: #{tpu_custom_call.1} parent=15 // pred_fallthru
          _
      $region16: #{tpu_custom_call.1} parent=5 // pred_fallthru
        _
      %p147 = scmp.le.s32.totalorder 1, %s12
      %p148 = scmp.lt.s32.totalorder %s12, 3
      %p149 = pnand %p147, %p148
      %p150 = pneg %p149
      // Predicated region
      $region21: #{tpu_custom_call.1} parent=5 // pred_check
        _
      $region22: #{tpu_custom_call.1} parent=5 // pred_check_branch
        %152 = sbr.rel (%p149) target = $region24
      $region23: #{tpu_custom_call.1} parent=5 // pred_region
        %s153 = ssub.s32 %s12, 1
        %s154 = sand.u32 %s39, 1
        %s155 = scalar_lea.sflag [#allocation3], %s154
        %s156 = sand.u32 %s39, 1
        %s157 = smul.addr %s156, 8
        %s158 = scalar_lea.vmem [#allocation2], %s157
        // Predicated region
        $region25: #{tpu_custom_call.1} parent=23 // pred_check
          %p159 = pneg %p52
        $region26: #{tpu_custom_call.1} parent=23 // pred_check_branch
          %161 = sbr.rel (%p159) target = $region28
        $region27: #{tpu_custom_call.1} parent=23 // pred_region
          %163 = dma.done %s155, 128
        $region28: #{tpu_custom_call.1} parent=23 // pred_fallthru
          _
        %s164 = sand.u32 %s39, 1
        %s165 = scalar_lea.sflag [#allocation3], %s164
        %s166 = sand.u32 %s39, 1
        %s167 = smul.addr %s166, 8
        %s168 = scalar_lea.vmem [#allocation2], %s167
        %p169 = pneg %p52
        %p170 = pneg %p49
        %p171 = pneg %p80
        %p172 = pneg %p77
        %p173 = scmp.lt.s32.totalorder %s21, 1
        %s174 = scalar_select %p173, %s21, 1
        %p175 = scmp.lt.s32.totalorder %s22, 0
        %s176 = scalar_select %p175, %s22, 0
        %s177 = sadd.s32 %s176, %s174
        %s178 = smul.addr %s177, 8
        %s179 = scalar_lea.vmem %s1, %s178
        %p180 = pneg %p108
        %p181 = pneg %p105
        %p182 = scmp.lt.s32.totalorder %s21, 1
        %s183 = scalar_select %p182, %s21, 1
        %p184 = scmp.lt.s32.totalorder %s22, 0
        %s185 = scalar_select %p184, %s22, 0
        %s186 = sadd.s32 %s185, %s183
        %s187 = smul.addr %s186, 8
        %s188 = scalar_lea.vmem %s2, %s187
        %p189 = scmp.lt.s32.totalorder %s21, 1
        %s190 = scalar_select %p189, %s21, 1
        %p191 = scmp.lt.s32.totalorder %s22, 0
        %s192 = scalar_select %p191, %s22, 0
        %s193 = sadd.s32 %s192, %s190
        %s194 = smul.addr %s193, 8
        %s195 = scalar_lea.vmem %s1, %s194
        %p196 = scmp.lt.s32.totalorder %s21, 1
        %s197 = scalar_select %p196, %s21, 1
        %p198 = scmp.lt.s32.totalorder %s22, 0
        %s199 = scalar_select %p198, %s22, 0
        %s200 = sadd.s32 %s199, %s197
        %s201 = smul.addr %s200, 8
        %s202 = scalar_lea.vmem %s2, %s201
        %v203 = vld [vmem:[%s158] sm:$0xff]
        %vm204 = vcmask 31744
        %205 = vst.msk [vmem:[%s195] sm:$0xff] %vm204, %v203
        %v206 = vld [vmem:[%s158] sm:$0xff]
        %208 = vrot.lane.b32.xlu0 %v206, 124
        %v209 = vpop.permute.xlu0 %208
        %211 = vst.msk [vmem:[%s202] sm:$0xff] %vm204, %v209
        %p212 = scmp.lt.s32.totalorder %s21, 1
        %s213 = scalar_select %p212, %s21, 1
        %p214 = scmp.lt.s32.totalorder %s22, 0
        %s215 = scalar_select %p214, %s22, 0
        %s216 = sadd.s32 %s215, %s213
        %s217 = smul.addr %s216, 8
        %s218 = scalar_lea.vmem %s1, %s217
        %p219 = scmp.lt.s32.totalorder %s21, 1
        %s220 = scalar_select %p219, %s21, 1
        %p221 = scmp.lt.s32.totalorder %s22, 0
        %s222 = scalar_select %p221, %s22, 0
        %s223 = sadd.s32 %s222, %s220
        %s224 = smul.addr %s223, 8
        %s225 = scalar_lea.vmem %s2, %s224
        // Predicated region
        $region29: #{tpu_custom_call.1} parent=23 // pred_check
          %p226 = pneg %p77
        $region30: #{tpu_custom_call.1} parent=23 // pred_check_branch
          %228 = sbr.rel (%p226) target = $region32
        $region31: #{tpu_custom_call.1} parent=23 // pred_region
          _
        $region32: #{tpu_custom_call.1} parent=23 // pred_fallthru
          _
        // Predicated region
        $region33: #{tpu_custom_call.1} parent=23 // pred_check
          %p229 = pneg %p105
        $region34: #{tpu_custom_call.1} parent=23 // pred_check_branch
          %231 = sbr.rel (%p229) target = $region36
        $region35: #{tpu_custom_call.1} parent=23 // pred_region
          _
        $region36: #{tpu_custom_call.1} parent=23 // pred_fallthru
          _
      $region24: #{tpu_custom_call.1} parent=5 // pred_fallthru
        _
      %p232 = scmp.le.s32.totalorder 2, %s12
      // Predicated region
      $region37: #{tpu_custom_call.1} parent=5 // pred_check
        %p233 = pneg %p232
      $region38: #{tpu_custom_call.1} parent=5 // pred_check_branch
        %235 = sbr.rel (%p233) target = $region40
      $region39: #{tpu_custom_call.1} parent=5 // pred_region
        %s236 = ssub.s32 %s12, 2
        // Predicated region
        $region41: #{tpu_custom_call.1} parent=39 // pred_check
          %p237 = pneg %p83
        $region42: #{tpu_custom_call.1} parent=39 // pred_check_branch
          %239 = sbr.rel (%p237) target = $region44
        $region43: #{tpu_custom_call.1} parent=39 // pred_region
          %p240 = scmp.lt.s32.totalorder %s23, 1
          %s241 = scalar_select %p240, %s23, 1
          %p242 = scmp.lt.s32.totalorder %s24, 0
          %s243 = scalar_select %p242, %s24, 0
          %s244 = sadd.s32 %s243, %s241
          %s245 = smul.addr %s244, 8
          %s246 = scalar_lea.vmem %s1, %s245
        $region44: #{tpu_custom_call.1} parent=39 // pred_fallthru
          _
        // Predicated region
        $region45: #{tpu_custom_call.1} parent=39 // pred_check
          %p247 = pneg %p111
        $region46: #{tpu_custom_call.1} parent=39 // pred_check_branch
          %249 = sbr.rel (%p247) target = $region48
        $region47: #{tpu_custom_call.1} parent=39 // pred_region
          %p250 = scmp.lt.s32.totalorder %s23, 1
          %s251 = scalar_select %p250, %s23, 1
          %p252 = scmp.lt.s32.totalorder %s24, 0
          %s253 = scalar_select %p252, %s24, 0
          %s254 = sadd.s32 %s253, %s251
          %s255 = smul.addr %s254, 8
          %s256 = scalar_lea.vmem %s2, %s255
        $region48: #{tpu_custom_call.1} parent=39 // pred_fallthru
          _
      $region40: #{tpu_custom_call.1} parent=5 // pred_fallthru
        _
    $region6: #{tpu_custom_call.1} parent=1 // loop_footer
      %s16 = sadd.s32 1, %s12
    $region7: #{tpu_custom_call.1} parent=1 // loop_footer_branch
      %11 = sbr.rel target = $region3
    $region8: #{tpu_custom_call.1} parent=1 // loop_exit
      _
    %257 = vsyncpa [#allocation3], 1
    %s258 = scalar_lea.sflag [#allocation3], 1
    %259 = vsyncpa %s258, 1

</llo_original>
